<compile_context>
chip_gen: v5e
topology: v5e:2x2
jax: 0.10.0
libtpu: 0.0.40
codegen_flags: <defaults>
</compile_context>

<pallas_src>
import math
import jax
import jax.numpy as jnp
from jax import lax
from jax.experimental import pallas as pl
from jax.experimental.pallas import tpu as pltpu

# ---------------- config (small, consistent with the module) ----------------
N_EMBD = 32
N_HEAD = 4
HEAD_DIM = N_EMBD // N_HEAD          # 8
KV_LORA_RANK = 16
Q_LORA_RANK = 16
ROPE_DIM = 8
BLOCK_SIZE = 8                       # sequence length T
BATCH = 2
RMS_EPS = 1e-6
NEG_INF = -1e30

HD = N_HEAD * HEAD_DIM               # 32
HR = N_HEAD * ROPE_DIM               # 32
FH = HEAD_DIM + ROPE_DIM             # 16  (full per-head q/k dim)
FULL = N_HEAD * FH                   # 64  (head-interleaved [content|rope] slab width)
BT = BATCH * BLOCK_SIZE              # 16

# ---- weight-slab layout (rows x WX_W lanes, bf16) ----
WX_W = 2 * FULL + KV_LORA_RANK + Q_LORA_RANK   # 160  (widest fused projection)
R_WX = 0                                        # x-projection rows        [0, 32)
R_KV = R_WX + N_EMBD                            # kv-decompress rows       [32, 48)
R_QD = R_KV + KV_LORA_RANK                      # q-decompress rows        [48, 64)
R_WO = R_QD + Q_LORA_RANK                       # output projection rows   [64, 96)
W_ROWS = R_WO + HD                              # 96


def mla_kernel(x_ref, w_ref, t_ref, out_ref):
    f32, bf16 = jnp.float32, jnp.bfloat16

    x = x_ref[...]                                             # (BT, C) bf16

    # static slices of the packed weight slab (all lane offsets start at 0)
    wx     = w_ref[R_WX:R_KV, 0:WX_W]                          # (32, 160)
    wkvdec = w_ref[R_KV:R_QD, 0:2 * FULL]                      # (16, 128)
    wqdec  = w_ref[R_QD:R_WO, 0:2 * FULL]                      # (16, 128)
    wo     = w_ref[R_WO:W_ROWS, 0:N_EMBD]                      # (32, 32)

    cos  = t_ref[0:BT, :]                                      # (BT, 64)
    sin  = t_ref[BT:2 * BT, :]                                 # (BT, 64)
    bias = t_ref[2 * BT:3 * BT, 0:BT]                          # (BT, BT) additive causal bias

    # ---- fused x projection: [k_rope_a(64, head-interleaved) | k_rope_rot(64) | kv_c | q_c] ----
    xp = jnp.dot(x, wx, preferred_element_type=f32)            # (BT, 160)
    kr_a     = xp[:, 0:FULL]
    kr_b     = xp[:, FULL:2 * FULL]
    kv_c_raw = xp[:, 2 * FULL:2 * FULL + KV_LORA_RANK]
    q_c      = xp[:, 2 * FULL + KV_LORA_RANK:WX_W]

    # ---- RMSNorm on kv_c (gamma folded into wkvdec rows wrapper-side) ----
    ms = jnp.mean(kv_c_raw * kv_c_raw, axis=-1, keepdims=True)
    kv_c = kv_c_raw * lax.rsqrt(ms + RMS_EPS)

    # ---- fused decompress matmuls (head-interleaved outputs) ----
    kv_dec = jnp.dot(kv_c.astype(bf16), wkvdec, preferred_element_type=f32)   # (BT, 128)
    k_content = kv_dec[:, 0:FULL]              # per-head [k_content | 0]
    v_all     = kv_dec[:, FULL:FULL + HD]      # (BT, 32)

    q_dec = jnp.dot(q_c.astype(bf16), wqdec, preferred_element_type=f32)      # (BT, 128)

    # ---- RoPE as two FMAs over the whole head-interleaved slabs ----
    # content lanes: cos=1 / sin=0 (Q) or zero operands (K); rope lanes: real cos/sin tables.
    k_full = k_content + kr_a * cos + kr_b * sin               # (BT, 64) per-head [kc | kr]
    q_full = q_dec[:, 0:FULL] * cos + q_dec[:, FULL:2 * FULL] * sin

    q16 = q_full.astype(bf16)
    k16 = k_full.astype(bf16)
    v16 = v_all.astype(bf16)

    scale = 1.0 / math.sqrt(FH)
    dims = (((1,), (1,)), ((), ()))                            # q @ k^T

    head_outs = []
    for h in range(N_HEAD):                                    # static unroll (4)
        qh = q16[:, h * FH:(h + 1) * FH]
        kh = k16[:, h * FH:(h + 1) * FH]
        vh = v16[:, h * HEAD_DIM:(h + 1) * HEAD_DIM]

        # single K=16 score dot per head; block-diag causal bias applied after scaling
        s = lax.dot_general(qh, kh, dims, preferred_element_type=f32) * scale + bias
        s = s - jnp.max(s, axis=-1, keepdims=True)
        p = jnp.exp(s)
        # approx=True keeps the divide on the EUP slot; use exact division if strict
        # f32 parity vs the PyTorch reference is required.
        p = p * pl.reciprocal(jnp.sum(p, axis=-1, keepdims=True), approx=True)
        # attn_dropout is identity at p=0.0; cross-batch probs are exactly 0 (no leakage)
        head_outs.append(jnp.dot(p.astype(bf16), vh, preferred_element_type=f32))

    # head outputs stay in registers; one lane-concat + one output matmul (no VMEM scratch)
    attn = jnp.concatenate(head_outs, axis=-1)                 # (BT, 32)
    out = jnp.dot(attn.astype(bf16), wo, preferred_element_type=f32)
    # resid_dropout is identity at p=0.0
    out_ref[...] = out.astype(out_ref.dtype)


def mla_forward(x, wslab, tslab):
    B, T, C = x.shape
    x2 = x.reshape(B * T, C).astype(jnp.bfloat16)              # fold batch, pre-cast to bf16

    out = pl.pallas_call(
        mla_kernel,
        out_shape=jax.ShapeDtypeStruct((B * T, C), jnp.float32),
        grid=(1,),                                             # single step: whole problem ~40 KB
        in_specs=[pl.BlockSpec(x2.shape, lambda i: (0, 0)),
                  pl.BlockSpec(wslab.shape, lambda i: (0, 0)),
                  pl.BlockSpec(tslab.shape, lambda i: (0, 0))],
        out_specs=pl.BlockSpec((B * T, C), lambda i: (0, 0)),
        compiler_params=pltpu.CompilerParams(
            dimension_semantics=("arbitrary",)),
        # TODO(synk): at real MLA sizes, add a parallel query-tile grid axis (engages both
        # v7x TensorCores) and re-tile with explicit vmem_limit_bytes budgeted against
        # v7x's 64 MiB VMEM (every BlockSpec input is double-buffered); at this toy size
        # the per-grid-step overhead (~0.35 us) exceeds the per-step work.
    )(x2, wslab, tslab)
    return out.reshape(B, T, C).astype(x.dtype)


# ---------------- wrapper-side parameter packing ----------------
def _rotate_half_weight(w):
    """Fold GPT-NeoX rotate_half (per head) into the projection weight columns."""
    in_dim = w.shape[0]
    w3 = w.reshape(in_dim, N_HEAD, ROPE_DIM)
    half = ROPE_DIM // 2
    w_rot = jnp.concatenate([-w3[:, :, half:], w3[:, :, :half]], axis=-1)
    return w_rot.reshape(in_dim, N_HEAD * ROPE_DIM)


def _interleave_heads(content, rope, in_dim):
    """Per-head [content(8) | rope(8)] column interleave; missing part -> zero columns."""
    f32 = jnp.float32
    c = (content if content is not None else jnp.zeros((in_dim, HD), f32))
    r = (rope if rope is not None else jnp.zeros((in_dim, HR), f32))
    c = c.reshape(in_dim, N_HEAD, HEAD_DIM)
    r = r.reshape(in_dim, N_HEAD, ROPE_DIM)
    return jnp.concatenate([c, r], axis=-1).reshape(in_dim, FULL)


def init_params(key, B, T):
    ks = jax.random.split(key, 8)
    std = 0.02
    f32 = jnp.float32
    bf16 = jnp.bfloat16

    wkv    = jax.random.normal(ks[0], (N_EMBD, KV_LORA_RANK), f32) * std
    wkdec  = jax.random.normal(ks[1], (KV_LORA_RANK, HD), f32) * std
    wvdec  = jax.random.normal(ks[2], (KV_LORA_RANK, HD), f32) * std
    wq     = jax.random.normal(ks[3], (N_EMBD, Q_LORA_RANK), f32) * std
    wqdec  = jax.random.normal(ks[4], (Q_LORA_RANK, HD), f32) * std
    wkrope = jax.random.normal(ks[5], (N_EMBD, HR), f32) * std
    wqrope = jax.random.normal(ks[6], (Q_LORA_RANK, HR), f32) * std
    wo     = jax.random.normal(ks[7], (HD, N_EMBD), f32) * std
    gkv    = jnp.ones((KV_LORA_RANK,), f32)                    # RMSNorm gamma

    wkrope_rot = _rotate_half_weight(wkrope)
    wqrope_rot = _rotate_half_weight(wqrope)

    # --- weight slab (bf16, 96 x 160): all projections packed, rope slabs at lane 0 ---
    # x-projection: [k_rope (interleaved, content lanes 0) | rotate_half(k_rope) | wkv | wq]
    wx_fused = jnp.concatenate(
        [_interleave_heads(None, wkrope, N_EMBD),
         _interleave_heads(None, wkrope_rot, N_EMBD),
         wkv, wq], axis=1)                                                    # (32, 160)
    # kv-decompress: [k_decompress (interleaved, rope lanes 0) | v_decompress | pad]
    # RMSNorm gamma folded into the rows (exact: gamma == 1).
    wkv_dec_fused = jnp.concatenate(
        [_interleave_heads(gkv[:, None] * wkdec, None, KV_LORA_RANK),
         gkv[:, None] * wvdec,
         jnp.zeros((KV_LORA_RANK, FULL - HD), f32)], axis=1)                  # (16, 128)
    # q-decompress: [ (q_decompress | q_rope) interleaved | (0 | rotate_half(q_rope)) ]
    wq_dec_fused = jnp.concatenate(
        [_interleave_heads(wqdec, wqrope, Q_LORA_RANK),
         _interleave_heads(None, wqrope_rot, Q_LORA_RANK)], axis=1)           # (16, 128)

    def pad_w(a):
        return jnp.concatenate([a, jnp.zeros((a.shape[0], WX_W - a.shape[1]), f32)], axis=1)

    wslab = jnp.concatenate(
        [wx_fused, pad_w(wkv_dec_fused), pad_w(wq_dec_fused), pad_w(wo)],
        axis=0).astype(bf16)                                                  # (96, 160)

    # --- table slab (f32, 3*BT x 64): cos | sin | additive block-diag causal bias ---
    inv_freq = 1.0 / (10000.0 ** (jnp.arange(0, ROPE_DIM, 2, dtype=f32) / ROPE_DIM))
    t = jnp.arange(T, dtype=f32)
    freqs = jnp.outer(t, inv_freq)                                            # (T, R/2)
    emb = jnp.concatenate([freqs, freqs], axis=-1)                            # (T, R)
    # per-head pattern: cos=1 / sin=0 on content lanes, real tables on rope lanes
    cos_h = jnp.concatenate([jnp.ones((T, HEAD_DIM), f32), jnp.cos(emb)], axis=-1)   # (T, 16)
    sin_h = jnp.concatenate([jnp.zeros((T, HEAD_DIM), f32), jnp.sin(emb)], axis=-1)
    cos64 = jnp.tile(cos_h, (B, N_HEAD))                                      # (B*T, 64)
    sin64 = jnp.tile(sin_h, (B, N_HEAD))

    bt = B * T
    row = jnp.arange(bt)[:, None]
    col = jnp.arange(bt)[None, :]
    allowed = (row // T == col // T) & (col % T <= row % T)                   # block-diag causal
    bias = jnp.where(allowed, 0.0, NEG_INF).astype(f32)                       # (BT, BT)
    bias_p = jnp.concatenate([bias, jnp.zeros((bt, FULL - bt), f32)], axis=1)

    tslab = jnp.concatenate([cos64, sin64, bias_p], axis=0)                   # (48, 64)
    return wslab, tslab


if __name__ == "__main__":
    key = jax.random.PRNGKey(0)
    k_x, k_p = jax.random.split(key)
    T = BLOCK_SIZE
    x = jax.random.normal(k_x, (BATCH, T, N_EMBD), dtype=jnp.float32)
    wslab, tslab = init_params(k_p, BATCH, T)

    out = mla_forward(x, wslab, tslab)
    jax.block_until_ready(out)
    assert out.shape == (BATCH, T, N_EMBD)
    print("KERNEL_OK")
</pallas_src>

<mosaic_0001>
module attributes {stable_mosaic.version = 11 : i64} {
  func.func @mla_kernel(%arg0: i32, %arg1: memref<16x32xbf16, #tpu.memory_space<vmem>>, %arg2: memref<96x160xbf16, #tpu.memory_space<vmem>>, %arg3: memref<48x64xf32, #tpu.memory_space<vmem>>, %arg4: memref<16x32xf32, #tpu.memory_space<vmem>>) attributes {dimension_semantics = [#tpu.dimension_semantics<arbitrary>], iteration_bounds = array<i64: 1>, scalar_prefetch = 0 : i64, scratch_operands = 0 : i64, tpu.core_type = #tpu.core_type<tc>, window_params = [{pipeline_mode = #tpu.pipeline_mode<synchronous>, transform_indices = @transform_0, window_bounds = array<i64: 16, 32>}, {pipeline_mode = #tpu.pipeline_mode<synchronous>, transform_indices = @transform_1, window_bounds = array<i64: 96, 160>}, {pipeline_mode = #tpu.pipeline_mode<synchronous>, transform_indices = @transform_2, window_bounds = array<i64: 48, 64>}, {pipeline_mode = #tpu.pipeline_mode<synchronous>, transform_indices = @transform_3, window_bounds = array<i64: 16, 32>}]} {
    %c0 = arith.constant 0 : index
    %c0_0 = arith.constant 0 : index
    %0 = vector.load %arg1[%c0, %c0_0] : memref<16x32xbf16, #tpu.memory_space<vmem>>, vector<16x32xbf16>
    %c0_1 = arith.constant 0 : index
    %c0_2 = arith.constant 0 : index
    %1 = vector.load %arg2[%c0_1, %c0_2] : memref<96x160xbf16, #tpu.memory_space<vmem>>, vector<32x160xbf16>
    %c32 = arith.constant 32 : index
    %c0_3 = arith.constant 0 : index
    %2 = vector.load %arg2[%c32, %c0_3] : memref<96x160xbf16, #tpu.memory_space<vmem>>, vector<16x128xbf16>
    %c48 = arith.constant 48 : index
    %c0_4 = arith.constant 0 : index
    %3 = vector.load %arg2[%c48, %c0_4] : memref<96x160xbf16, #tpu.memory_space<vmem>>, vector<16x128xbf16>
    %c64 = arith.constant 64 : index
    %c0_5 = arith.constant 0 : index
    %4 = vector.load %arg2[%c64, %c0_5] : memref<96x160xbf16, #tpu.memory_space<vmem>>, vector<32x32xbf16>
    %c0_6 = arith.constant 0 : index
    %c0_7 = arith.constant 0 : index
    %5 = vector.load %arg3[%c0_6, %c0_7] : memref<48x64xf32, #tpu.memory_space<vmem>>, vector<16x64xf32>
    %c16 = arith.constant 16 : index
    %c0_8 = arith.constant 0 : index
    %6 = vector.load %arg3[%c16, %c0_8] : memref<48x64xf32, #tpu.memory_space<vmem>>, vector<16x64xf32>
    %c32_9 = arith.constant 32 : index
    %c0_10 = arith.constant 0 : index
    %7 = vector.load %arg3[%c32_9, %c0_10] : memref<48x64xf32, #tpu.memory_space<vmem>>, vector<16x16xf32>
    %cst = arith.constant dense<0.000000e+00> : vector<16x160xf32>
    %8 = tpu.matmul %0, %1, %cst {dimension_numbers = #tpu.dot_dimension_numbers<[1], [0], [0], [1], [0, 0, 1, 1], [], []>} : vector<16x32xbf16>, vector<32x160xbf16>, vector<16x160xf32> -> vector<16x160xf32>
    %9 = vector.extract_strided_slice %8 {offsets = [0, 0], sizes = [16, 64], strides = [1, 1]} : vector<16x160xf32> to vector<16x64xf32>
    %10 = vector.extract_strided_slice %8 {offsets = [0, 64], sizes = [16, 64], strides = [1, 1]} : vector<16x160xf32> to vector<16x64xf32>
    %11 = vector.extract_strided_slice %8 {offsets = [0, 128], sizes = [16, 16], strides = [1, 1]} : vector<16x160xf32> to vector<16x16xf32>
    %12 = vector.extract_strided_slice %8 {offsets = [0, 144], sizes = [16, 16], strides = [1, 1]} : vector<16x160xf32> to vector<16x16xf32>
    %13 = arith.mulf %11, %11 : vector<16x16xf32>
    %cst_11 = arith.constant dense<0.000000e+00> : vector<16xf32>
    %14 = vector.multi_reduction <add>, %13, %cst_11 [1] : vector<16x16xf32> to vector<16xf32>
    %15 = vector.shape_cast %14 : vector<16xf32> to vector<16x1xf32>
    %cst_12 = arith.constant 1.600000e+01 : f32
    %16 = vector.broadcast %cst_12 : f32 to vector<16x1xf32>
    %17 = arith.divf %15, %16 : vector<16x1xf32>
    %cst_13 = arith.constant 9.99999997E-7 : f32
    %18 = vector.broadcast %cst_13 : f32 to vector<16x1xf32>
    %19 = arith.addf %17, %18 : vector<16x1xf32>
    %20 = math.rsqrt %19 : vector<16x1xf32>
    %21 = vector.broadcast %20 : vector<16x1xf32> to vector<16x16xf32>
    %22 = arith.mulf %11, %21 : vector<16x16xf32>
    %23 = arith.truncf %22 : vector<16x16xf32> to vector<16x16xbf16>
    %cst_14 = arith.constant dense<0.000000e+00> : vector<16x128xf32>
    %24 = tpu.matmul %23, %2, %cst_14 {dimension_numbers = #tpu.dot_dimension_numbers<[1], [0], [0], [1], [0, 0, 1, 1], [], []>} : vector<16x16xbf16>, vector<16x128xbf16>, vector<16x128xf32> -> vector<16x128xf32>
    %25 = vector.extract_strided_slice %24 {offsets = [0, 0], sizes = [16, 64], strides = [1, 1]} : vector<16x128xf32> to vector<16x64xf32>
    %26 = vector.extract_strided_slice %24 {offsets = [0, 64], sizes = [16, 32], strides = [1, 1]} : vector<16x128xf32> to vector<16x32xf32>
    %27 = arith.truncf %12 : vector<16x16xf32> to vector<16x16xbf16>
    %cst_15 = arith.constant dense<0.000000e+00> : vector<16x128xf32>
    %28 = tpu.matmul %27, %3, %cst_15 {dimension_numbers = #tpu.dot_dimension_numbers<[1], [0], [0], [1], [0, 0, 1, 1], [], []>} : vector<16x16xbf16>, vector<16x128xbf16>, vector<16x128xf32> -> vector<16x128xf32>
    %29 = arith.mulf %9, %5 : vector<16x64xf32>
    %30 = arith.addf %25, %29 : vector<16x64xf32>
    %31 = arith.mulf %10, %6 : vector<16x64xf32>
    %32 = arith.addf %30, %31 : vector<16x64xf32>
    %33 = vector.extract_strided_slice %28 {offsets = [0, 0], sizes = [16, 64], strides = [1, 1]} : vector<16x128xf32> to vector<16x64xf32>
    %34 = arith.mulf %33, %5 : vector<16x64xf32>
    %35 = vector.extract_strided_slice %28 {offsets = [0, 64], sizes = [16, 64], strides = [1, 1]} : vector<16x128xf32> to vector<16x64xf32>
    %36 = arith.mulf %35, %6 : vector<16x64xf32>
    %37 = arith.addf %34, %36 : vector<16x64xf32>
    %38 = arith.truncf %37 : vector<16x64xf32> to vector<16x64xbf16>
    %39 = arith.truncf %32 : vector<16x64xf32> to vector<16x64xbf16>
    %40 = arith.truncf %26 : vector<16x32xf32> to vector<16x32xbf16>
    %41 = vector.extract_strided_slice %38 {offsets = [0, 0], sizes = [16, 16], strides = [1, 1]} : vector<16x64xbf16> to vector<16x16xbf16>
    %42 = vector.extract_strided_slice %39 {offsets = [0, 0], sizes = [16, 16], strides = [1, 1]} : vector<16x64xbf16> to vector<16x16xbf16>
    %43 = vector.extract_strided_slice %40 {offsets = [0, 0], sizes = [16, 8], strides = [1, 1]} : vector<16x32xbf16> to vector<16x8xbf16>
    %cst_16 = arith.constant dense<0.000000e+00> : vector<16x16xf32>
    %44 = tpu.matmul %41, %42, %cst_16 {dimension_numbers = #tpu.dot_dimension_numbers<[1], [1], [0], [0], [0, 0, 1, 0], [], []>} : vector<16x16xbf16>, vector<16x16xbf16>, vector<16x16xf32> -> vector<16x16xf32>
    %cst_17 = arith.constant 2.500000e-01 : f32
    %45 = vector.broadcast %cst_17 : f32 to vector<16x16xf32>
    %46 = arith.mulf %44, %45 : vector<16x16xf32>
    %47 = arith.addf %46, %7 : vector<16x16xf32>
    %cst_18 = arith.constant dense<0xFF800000> : vector<16xf32>
    %48 = vector.multi_reduction <maximumf>, %47, %cst_18 [1] : vector<16x16xf32> to vector<16xf32>
    %49 = vector.shape_cast %48 : vector<16xf32> to vector<16x1xf32>
    %50 = vector.broadcast %49 : vector<16x1xf32> to vector<16x16xf32>
    %51 = arith.subf %47, %50 : vector<16x16xf32>
    %52 = math.exp %51 : vector<16x16xf32>
    %cst_19 = arith.constant dense<0.000000e+00> : vector<16xf32>
    %53 = vector.multi_reduction <add>, %52, %cst_19 [1] : vector<16x16xf32> to vector<16xf32>
    %54 = vector.shape_cast %53 : vector<16xf32> to vector<16x1xf32>
    %55 = tpu.reciprocal %54 {approx = true} : vector<16x1xf32> -> vector<16x1xf32>
    %56 = vector.broadcast %55 : vector<16x1xf32> to vector<16x16xf32>
    %57 = arith.mulf %52, %56 : vector<16x16xf32>
    %58 = arith.truncf %57 : vector<16x16xf32> to vector<16x16xbf16>
    %cst_20 = arith.constant dense<0.000000e+00> : vector<16x8xf32>
    %59 = tpu.matmul %58, %43, %cst_20 {dimension_numbers = #tpu.dot_dimension_numbers<[1], [0], [0], [1], [0, 0, 1, 1], [], []>} : vector<16x16xbf16>, vector<16x8xbf16>, vector<16x8xf32> -> vector<16x8xf32>
    %60 = vector.extract_strided_slice %38 {offsets = [0, 16], sizes = [16, 16], strides = [1, 1]} : vector<16x64xbf16> to vector<16x16xbf16>
    %61 = vector.extract_strided_slice %39 {offsets = [0, 16], sizes = [16, 16], strides = [1, 1]} : vector<16x64xbf16> to vector<16x16xbf16>
    %62 = vector.extract_strided_slice %40 {offsets = [0, 8], sizes = [16, 8], strides = [1, 1]} : vector<16x32xbf16> to vector<16x8xbf16>
    %cst_21 = arith.constant dense<0.000000e+00> : vector<16x16xf32>
    %63 = tpu.matmul %60, %61, %cst_21 {dimension_numbers = #tpu.dot_dimension_numbers<[1], [1], [0], [0], [0, 0, 1, 0], [], []>} : vector<16x16xbf16>, vector<16x16xbf16>, vector<16x16xf32> -> vector<16x16xf32>
    %cst_22 = arith.constant 2.500000e-01 : f32
    %64 = vector.broadcast %cst_22 : f32 to vector<16x16xf32>
    %65 = arith.mulf %63, %64 : vector<16x16xf32>
    %66 = arith.addf %65, %7 : vector<16x16xf32>
    %cst_23 = arith.constant dense<0xFF800000> : vector<16xf32>
    %67 = vector.multi_reduction <maximumf>, %66, %cst_23 [1] : vector<16x16xf32> to vector<16xf32>
    %68 = vector.shape_cast %67 : vector<16xf32> to vector<16x1xf32>
    %69 = vector.broadcast %68 : vector<16x1xf32> to vector<16x16xf32>
    %70 = arith.subf %66, %69 : vector<16x16xf32>
    %71 = math.exp %70 : vector<16x16xf32>
    %cst_24 = arith.constant dense<0.000000e+00> : vector<16xf32>
    %72 = vector.multi_reduction <add>, %71, %cst_24 [1] : vector<16x16xf32> to vector<16xf32>
    %73 = vector.shape_cast %72 : vector<16xf32> to vector<16x1xf32>
    %74 = tpu.reciprocal %73 {approx = true} : vector<16x1xf32> -> vector<16x1xf32>
    %75 = vector.broadcast %74 : vector<16x1xf32> to vector<16x16xf32>
    %76 = arith.mulf %71, %75 : vector<16x16xf32>
    %77 = arith.truncf %76 : vector<16x16xf32> to vector<16x16xbf16>
    %cst_25 = arith.constant dense<0.000000e+00> : vector<16x8xf32>
    %78 = tpu.matmul %77, %62, %cst_25 {dimension_numbers = #tpu.dot_dimension_numbers<[1], [0], [0], [1], [0, 0, 1, 1], [], []>} : vector<16x16xbf16>, vector<16x8xbf16>, vector<16x8xf32> -> vector<16x8xf32>
    %79 = vector.extract_strided_slice %38 {offsets = [0, 32], sizes = [16, 16], strides = [1, 1]} : vector<16x64xbf16> to vector<16x16xbf16>
    %80 = vector.extract_strided_slice %39 {offsets = [0, 32], sizes = [16, 16], strides = [1, 1]} : vector<16x64xbf16> to vector<16x16xbf16>
    %81 = vector.extract_strided_slice %40 {offsets = [0, 16], sizes = [16, 8], strides = [1, 1]} : vector<16x32xbf16> to vector<16x8xbf16>
    %cst_26 = arith.constant dense<0.000000e+00> : vector<16x16xf32>
    %82 = tpu.matmul %79, %80, %cst_26 {dimension_numbers = #tpu.dot_dimension_numbers<[1], [1], [0], [0], [0, 0, 1, 0], [], []>} : vector<16x16xbf16>, vector<16x16xbf16>, vector<16x16xf32> -> vector<16x16xf32>
    %cst_27 = arith.constant 2.500000e-01 : f32
    %83 = vector.broadcast %cst_27 : f32 to vector<16x16xf32>
    %84 = arith.mulf %82, %83 : vector<16x16xf32>
    %85 = arith.addf %84, %7 : vector<16x16xf32>
    %cst_28 = arith.constant dense<0xFF800000> : vector<16xf32>
    %86 = vector.multi_reduction <maximumf>, %85, %cst_28 [1] : vector<16x16xf32> to vector<16xf32>
    %87 = vector.shape_cast %86 : vector<16xf32> to vector<16x1xf32>
    %88 = vector.broadcast %87 : vector<16x1xf32> to vector<16x16xf32>
    %89 = arith.subf %85, %88 : vector<16x16xf32>
    %90 = math.exp %89 : vector<16x16xf32>
    %cst_29 = arith.constant dense<0.000000e+00> : vector<16xf32>
    %91 = vector.multi_reduction <add>, %90, %cst_29 [1] : vector<16x16xf32> to vector<16xf32>
    %92 = vector.shape_cast %91 : vector<16xf32> to vector<16x1xf32>
    %93 = tpu.reciprocal %92 {approx = true} : vector<16x1xf32> -> vector<16x1xf32>
    %94 = vector.broadcast %93 : vector<16x1xf32> to vector<16x16xf32>
    %95 = arith.mulf %90, %94 : vector<16x16xf32>
    %96 = arith.truncf %95 : vector<16x16xf32> to vector<16x16xbf16>
    %cst_30 = arith.constant dense<0.000000e+00> : vector<16x8xf32>
    %97 = tpu.matmul %96, %81, %cst_30 {dimension_numbers = #tpu.dot_dimension_numbers<[1], [0], [0], [1], [0, 0, 1, 1], [], []>} : vector<16x16xbf16>, vector<16x8xbf16>, vector<16x8xf32> -> vector<16x8xf32>
    %98 = vector.extract_strided_slice %38 {offsets = [0, 48], sizes = [16, 16], strides = [1, 1]} : vector<16x64xbf16> to vector<16x16xbf16>
    %99 = vector.extract_strided_slice %39 {offsets = [0, 48], sizes = [16, 16], strides = [1, 1]} : vector<16x64xbf16> to vector<16x16xbf16>
    %100 = vector.extract_strided_slice %40 {offsets = [0, 24], sizes = [16, 8], strides = [1, 1]} : vector<16x32xbf16> to vector<16x8xbf16>
    %cst_31 = arith.constant dense<0.000000e+00> : vector<16x16xf32>
    %101 = tpu.matmul %98, %99, %cst_31 {dimension_numbers = #tpu.dot_dimension_numbers<[1], [1], [0], [0], [0, 0, 1, 0], [], []>} : vector<16x16xbf16>, vector<16x16xbf16>, vector<16x16xf32> -> vector<16x16xf32>
    %cst_32 = arith.constant 2.500000e-01 : f32
    %102 = vector.broadcast %cst_32 : f32 to vector<16x16xf32>
    %103 = arith.mulf %101, %102 : vector<16x16xf32>
    %104 = arith.addf %103, %7 : vector<16x16xf32>
    %cst_33 = arith.constant dense<0xFF800000> : vector<16xf32>
    %105 = vector.multi_reduction <maximumf>, %104, %cst_33 [1] : vector<16x16xf32> to vector<16xf32>
    %106 = vector.shape_cast %105 : vector<16xf32> to vector<16x1xf32>
    %107 = vector.broadcast %106 : vector<16x1xf32> to vector<16x16xf32>
    %108 = arith.subf %104, %107 : vector<16x16xf32>
    %109 = math.exp %108 : vector<16x16xf32>
    %cst_34 = arith.constant dense<0.000000e+00> : vector<16xf32>
    %110 = vector.multi_reduction <add>, %109, %cst_34 [1] : vector<16x16xf32> to vector<16xf32>
    %111 = vector.shape_cast %110 : vector<16xf32> to vector<16x1xf32>
    %112 = tpu.reciprocal %111 {approx = true} : vector<16x1xf32> -> vector<16x1xf32>
    %113 = vector.broadcast %112 : vector<16x1xf32> to vector<16x16xf32>
    %114 = arith.mulf %109, %113 : vector<16x16xf32>
    %115 = arith.truncf %114 : vector<16x16xf32> to vector<16x16xbf16>
    %cst_35 = arith.constant dense<0.000000e+00> : vector<16x8xf32>
    %116 = tpu.matmul %115, %100, %cst_35 {dimension_numbers = #tpu.dot_dimension_numbers<[1], [0], [0], [1], [0, 0, 1, 1], [], []>} : vector<16x16xbf16>, vector<16x8xbf16>, vector<16x8xf32> -> vector<16x8xf32>
    %117 = tpu.concatenate %59, %78, %97, %116 in 1 : vector<16x8xf32>, vector<16x8xf32>, vector<16x8xf32>, vector<16x8xf32> -> vector<16x32xf32>
    %118 = arith.truncf %117 : vector<16x32xf32> to vector<16x32xbf16>
    %cst_36 = arith.constant dense<0.000000e+00> : vector<16x32xf32>
    %119 = tpu.matmul %118, %4, %cst_36 {dimension_numbers = #tpu.dot_dimension_numbers<[1], [0], [0], [1], [0, 0, 1, 1], [], []>} : vector<16x32xbf16>, vector<32x32xbf16>, vector<16x32xf32> -> vector<16x32xf32>
    %c0_37 = arith.constant 0 : index
    %c0_38 = arith.constant 0 : index
    %120 = vector.load %arg4[%c0_37, %c0_38] : memref<16x32xf32, #tpu.memory_space<vmem>>, vector<16x32xf32>
    tpu.vector_store %arg4[%c0_37, %c0_38], %119 {strides = array<i32>} : memref<16x32xf32, #tpu.memory_space<vmem>>, vector<16x32xf32>,
    return
  }
  func.func @transform_0(%arg0: i32) -> (i32, i32) {
    %c0_i32 = arith.constant 0 : i32
    %c0_i32_0 = arith.constant 0 : i32
    %c0_i32_1 = arith.constant 0 : i32
    return %c0_i32, %c0_i32_0 : i32, i32
  }
  func.func @transform_1(%arg0: i32) -> (i32, i32) {
    %c0_i32 = arith.constant 0 : i32
    %c0_i32_0 = arith.constant 0 : i32
    %c0_i32_1 = arith.constant 0 : i32
    return %c0_i32, %c0_i32_0 : i32, i32
  }
  func.func @transform_2(%arg0: i32) -> (i32, i32) {
    %c0_i32 = arith.constant 0 : i32
    %c0_i32_0 = arith.constant 0 : i32
    %c0_i32_1 = arith.constant 0 : i32
    return %c0_i32, %c0_i32_0 : i32, i32
  }
  func.func @transform_3(%arg0: i32) -> (i32, i32) {
    %c0_i32 = arith.constant 0 : i32
    %c0_i32_0 = arith.constant 0 : i32
    %c0_i32_1 = arith.constant 0 : i32
    return %c0_i32, %c0_i32_0 : i32, i32
  }
}

</mosaic_0001>

<llo_original>
// kernel: tpu_custom_call.1
$region0: #{tpu_custom_call.1}
  #allocation0 [shape = 'u32[]', space=smem, size = 0x4, offset = 0x4, fixed_abs, tag = 'smem constant byte address 0x4 - core index']
  #allocation1 [shape = 'u32[72,128]{1,0:T(1,128)}', space=vmem, size = 0x9000, scoped, tag = 'internal scratch']
  %s0 = inlined_call_operand.vmem [shape: bf16[16,32], index: 0, kind: input, shape index: {}]
  %s1 = inlined_call_operand.vmem [shape: bf16[96,160], index: 1, kind: input, shape index: {}]
  %s2 = inlined_call_operand.vmem [shape: f32[48,64], index: 2, kind: input, shape index: {}]
  %s3 = inlined_call_operand.hbm [shape: f32[16,32], index: 3, kind: output, shape index: {}]
  %s4 = sld [smem:[#allocation0]]
  $region22: #{tpu_custom_call.1} parent=0
    _
  %s6 = ssub.s32 1, %s4
  %s7 = scalar_select 0, %s6, %s4
  $region1: #{tpu_custom_call.1} parent=0
    #allocation2 [shape = 'u8[8192]{0}', space=vmem, size = 0x2000, scoped, tag = 'output window, operand 0, single buffered']
    #allocation3 [shape = 's32[1]{0}', space=sflag, size = 0x4, scoped, tag = 'scoped memory for tpu_custom_call.1']
    %8 = vsyncpa [#allocation3], 0
    // Predicated region
    $region2: #{tpu_custom_call.1} parent=1 // pred_check
      _
    $region3: #{tpu_custom_call.1} parent=1 // pred_check_branch
      %10 = sbr.rel (0) target = $region5
    $region4: #{tpu_custom_call.1} parent=1 // pred_region
      _
    $region5: #{tpu_custom_call.1} parent=1 // pred_fallthru
      _
    // Predicated region
    $region6: #{tpu_custom_call.1} parent=1 // pred_check
      _
    $region7: #{tpu_custom_call.1} parent=1 // pred_check_branch
      %12 = sbr.rel (0) target = $region9
    $region8: #{tpu_custom_call.1} parent=1 // pred_region
      _
    $region9: #{tpu_custom_call.1} parent=1 // pred_fallthru
      _
    // Predicated region
    $region10: #{tpu_custom_call.1} parent=1 // pred_check
      _
    $region11: #{tpu_custom_call.1} parent=1 // pred_check_branch
      %14 = sbr.rel (0) target = $region13
    $region12: #{tpu_custom_call.1} parent=1 // pred_region
      _
    $region13: #{tpu_custom_call.1} parent=1 // pred_fallthru
      _
    %v16 = vld [vmem:[%s0] sm:$0xf]
    %v17 = vld [vmem:[%s0 + $0x4] sm:$0xf]
    %v18 = vld [vmem:[%s1] sm:$0xff]
    %v19 = vld [vmem:[%s1 + $0x8] sm:$0xff]
    %v20 = vld [vmem:[%s1 + $0x10] sm:$0xff]
    %v21 = vld [vmem:[%s1 + $0x18] sm:$0xff]
    %v22 = vld [vmem:[%s1 + $0x20] sm:$0xf]
    %v23 = vld [vmem:[%s1 + $0x28] sm:$0xf]
    %v24 = vld [vmem:[%s1 + $0x30] sm:$0xf]
    %v25 = vld [vmem:[%s1 + $0x38] sm:$0xf]
    %v26 = vld [vmem:[%s1 + $0x40] sm:$0xf]
    %v27 = vld [vmem:[%s1 + $0x48] sm:$0xf]
    %v28 = vld [vmem:[%s1 + $0x50] sm:$0xf]
    %v29 = vld [vmem:[%s1 + $0x58] sm:$0xf]
    %v30 = vld [vmem:[%s2] sm:$0xff]
    %v31 = vld [vmem:[%s2 + $0x8] sm:$0xff]
    %v32 = vld [vmem:[%s2 + $0x10] sm:$0xff]
    %v33 = vld [vmem:[%s2 + $0x18] sm:$0xff]
    %v34 = vld [vmem:[%s2 + $0x20] sm:$0xff]
    %v35 = vld [vmem:[%s2 + $0x28] sm:$0xff]
    %v38 = vunpack.c.l.b16 %v16
    %v39 = vunpack.c.l.b16 %v17
    %v40 = vpack.c.b16 %v39, %v38
    %v45 = vunpack.c.l.b16 %v18
    %v46 = vunpack.c.h.b16 %v18
    %v47 = vunpack.c.l.b16 %v19
    %v48 = vunpack.c.h.b16 %v19
    %v49 = vunpack.c.l.b16 %v20
    %v50 = vunpack.c.h.b16 %v20
    %v51 = vunpack.c.l.b16 %v21
    %v52 = vunpack.c.h.b16 %v21
    %v53 = vpack.c.b16 %v47, %v45
    %v54 = vpack.c.b16 %v48, %v46
    %v55 = vpack.c.b16 %v51, %v49
    %v56 = vpack.c.b16 %v52, %v50
    %vm61 = vcmask 261120
    %v63 = vsel %vm61, %v40, 0
    %65 = vmatpush.bf16.msra.mxu0 0
    %66 = vmatpush.bf16.msra.mxu0 0
    %67 = vmatpush.bf16.msra.mxu0 0
    %68 = vmatpush.bf16.msra.mxu0 0
    %69 = vmatpush.bf16.msra.mxu0 0
    %70 = vmatpush.bf16.msra.mxu0 0
    %71 = vmatpush.bf16.msra.mxu0 %v55
    %72 = vmatpush.bf16.msra.mxu0 %v53
    %73 = vmatmul.bf16.gmra.mxu0 %v63
    %v74 = vpop.f32.mrf.mxu0
    %v75 = vadd.f32 0.0, %v74
    %v76 = vpop.f32.mrf.mxu0
    %v77 = vadd.f32 0.0, %v76
    %78 = vdwg.mxu0
    %79 = vmatpush.bf16.msra.mxu0 0
    %80 = vmatpush.bf16.msra.mxu0 0
    %81 = vmatpush.bf16.msra.mxu0 0
    %82 = vmatpush.bf16.msra.mxu0 0
    %83 = vmatpush.bf16.msra.mxu0 0
    %84 = vmatpush.bf16.msra.mxu0 0
    %85 = vmatpush.bf16.msra.mxu0 %v56
    %86 = vmatpush.bf16.msra.mxu0 %v54
    %87 = vmatmul.bf16.gmra.mxu0 %v63
    %v88 = vpop.f32.mrf.mxu0
    %v89 = vadd.f32 0.0, %v88
    %v90 = vpop.f32.mrf.mxu0
    %v91 = vadd.f32 0.0, %v90
    %92 = vdwg.mxu0
    %v93 = vmul.f32 %v89, %v89
    %v94 = vmul.f32 %v91, %v91
    %vm95 = vcmask 130048
    %v96 = vsel %vm95, %v93, 0.0
    %97 = vadd.xlane.f32.xlu0 %v96
    %v98 = vpop.xlane.xlu0 %97
    %v99 = vsel %vm95, %v94, 0.0
    %100 = vadd.xlane.f32.xlu0 %v99
    %v101 = vpop.xlane.xlu0 %100
    %v102 = vrcp.pop 16.0
    %v103 = vmul.f32 16.0, %v102
    %v104 = vsub.f32 1.0, %v103
    %v105 = vmul.f32 %v102, %v104
    %v106 = vadd.f32 %v102, %v105
    %vm107 = vweird.f32 %v102
    %v108 = vsel %vm107, %v102, %v106
    %v109 = vmul.f32 %v98, %v108
    %v110 = vmul.f32 %v101, %v108
    %v111 = vadd.f32 %v109, 1e-06
    %v112 = vadd.f32 %v110, 1e-06
    %v113 = vrsqrt.pop %v111
    %v114 = vmul.f32 %v113, %v111
    %v115 = vmul.f32 %v114, %v113
    %v116 = vmul.f32 0.5, %v115
    %v117 = vsub.f32 1.5, %v116
    %v118 = vmul.f32 %v113, %v117
    %vm119 = vweird.f32 %v111
    %vm120 = vweird.f32 %v113
    %vm121 = vmor %vm119, %vm120
    %v122 = vsel %vm121, %v113, %v118
    %v123 = vrsqrt.pop %v112
    %v124 = vmul.f32 %v123, %v112
    %v125 = vmul.f32 %v124, %v123
    %v126 = vmul.f32 0.5, %v125
    %v127 = vsub.f32 1.5, %v126
    %v128 = vmul.f32 %v123, %v127
    %vm129 = vweird.f32 %v112
    %vm130 = vweird.f32 %v123
    %vm131 = vmor %vm129, %vm130
    %v132 = vsel %vm131, %v123, %v128
    %v133 = vmul.f32 %v89, %v122
    %v134 = vmul.f32 %v91, %v132
    %v135 = vpack.c.bf16 %v134, %v133
    %v138 = vunpack.c.l.b16 %v22
    %v139 = vunpack.c.l.b16 %v23
    %v140 = vpack.c.b16 %v139, %v138
    %v143 = vsel %vm95, %v135, 0
    %145 = vmatpush.bf16.msra.mxu0 0
    %146 = vmatpush.bf16.msra.mxu0 0
    %147 = vmatpush.bf16.msra.mxu0 0
    %148 = vmatpush.bf16.msra.mxu0 0
    %149 = vmatpush.bf16.msra.mxu0 0
    %150 = vmatpush.bf16.msra.mxu0 0
    %151 = vmatpush.bf16.msra.mxu0 0
    %152 = vmatpush.bf16.msra.mxu0 %v140
    %153 = vmatmul.bf16.gmra.mxu0 %v143
    %v154 = vpop.f32.mrf.mxu0
    %v155 = vadd.f32 0.0, %v154
    %v156 = vpop.f32.mrf.mxu0
    %v157 = vadd.f32 0.0, %v156
    %158 = vdwg.mxu0
    %v159 = vpack.c.bf16 %v91, %v89
    %161 = vrot.lane.b32.xlu0 %v159, 112
    %v162 = vpop.permute.xlu0 %161
    %v165 = vunpack.c.l.b16 %v24
    %v166 = vunpack.c.l.b16 %v25
    %v167 = vpack.c.b16 %v166, %v165
    %v170 = vsel %vm95, %v162, 0
    %172 = vmatpush.bf16.msra.mxu0 0
    %173 = vmatpush.bf16.msra.mxu0 0
    %174 = vmatpush.bf16.msra.mxu0 0
    %175 = vmatpush.bf16.msra.mxu0 0
    %176 = vmatpush.bf16.msra.mxu0 0
    %177 = vmatpush.bf16.msra.mxu0 0
    %178 = vmatpush.bf16.msra.mxu0 0
    %179 = vmatpush.bf16.msra.mxu0 %v167
    %180 = vmatmul.bf16.gmra.mxu0 %v170
    %v181 = vpop.f32.mrf.mxu0
    %v182 = vadd.f32 0.0, %v181
    %v183 = vpop.f32.mrf.mxu0
    %v184 = vadd.f32 0.0, %v183
    %185 = vdwg.mxu0
    %v186 = vmul.f32 %v75, %v30
    %v187 = vmul.f32 %v77, %v31
    %v188 = vadd.f32 %v155, %v186
    %v189 = vadd.f32 %v157, %v187
    %192 = vrot.lane.b32.xlu0 %v32, 64
    %v193 = vpop.permute.xlu0 %192
    %194 = vrot.lane.b32.xlu0 %v33, 64
    %v195 = vpop.permute.xlu0 %194
    %v198 = vmul.f32 %v75, %v193
    %v199 = vmul.f32 %v77, %v195
    %202 = vrot.lane.b32.xlu0 %v198, 64
    %v203 = vpop.permute.xlu0 %202
    %204 = vrot.lane.b32.xlu0 %v199, 64
    %v205 = vpop.permute.xlu0 %204
    %v208 = vadd.f32 %v188, %v203
    %v209 = vadd.f32 %v189, %v205
    %v210 = vmul.f32 %v182, %v30
    %v211 = vmul.f32 %v184, %v31
    %v212 = vmul.f32 %v182, %v193
    %v213 = vmul.f32 %v184, %v195
    %216 = vrot.lane.b32.xlu0 %v212, 64
    %v217 = vpop.permute.xlu0 %216
    %218 = vrot.lane.b32.xlu0 %v213, 64
    %v219 = vpop.permute.xlu0 %218
    %v222 = vadd.f32 %v210, %v217
    %v223 = vadd.f32 %v211, %v219
    %v224 = vpack.c.bf16 %v222, %v222
    %v225 = vpack.c.bf16 %v223, %v223
    %v226 = vpack.c.bf16 %v208, %v208
    %v227 = vpack.c.bf16 %v209, %v209
    %v228 = vpack.c.bf16 %v155, %v155
    %v229 = vpack.c.bf16 %v157, %v157
    %v232 = vunpack.c.l.b16 %v224
    %v233 = vunpack.c.l.b16 %v225
    %v234 = vpack.c.b16 %v233, %v232
    %v237 = vunpack.c.l.b16 %v226
    %v238 = vunpack.c.l.b16 %v227
    %v239 = vpack.c.b16 %v238, %v237
    %v241 = vsel %vm95, %v234, 0
    %v244 = vsel %vm95, %v239, 0
    %246 = vmatpush.bf16.xpose.msra.mxu0 0
    %247 = vmatpush.bf16.xpose.msra.mxu0 0
    %248 = vmatpush.bf16.xpose.msra.mxu0 0
    %249 = vmatpush.bf16.xpose.msra.mxu0 0
    %250 = vmatpush.bf16.xpose.msra.mxu0 0
    %251 = vmatpush.bf16.xpose.msra.mxu0 0
    %252 = vmatpush.bf16.xpose.msra.mxu0 0
    %253 = vmatpush.bf16.xpose.msra.mxu0 %v244
    %254 = vmatmul.bf16.gmra.mxu0 %v241
    %v255 = vpop.f32.mrf.mxu0
    %v256 = vadd.f32 0.0, %v255
    %v257 = vpop.f32.mrf.mxu0
    %v258 = vadd.f32 0.0, %v257
    %259 = vdwg.mxu0
    %v260 = vmul.f32 %v256, 0.25
    %v261 = vmul.f32 %v258, 0.25
    %v262 = vadd.f32 %v260, %v34
    %v263 = vadd.f32 %v261, %v35
    %v264 = vsel %vm95, %v262, -inf
    %265 = vmax.xlane.f32.xlu0 %v264
    %v266 = vpop.xlane.xlu0 %265
    %v267 = vsel %vm95, %v263, -inf
    %268 = vmax.xlane.f32.xlu0 %v267
    %v269 = vpop.xlane.xlu0 %268
    %v270 = vsub.f32 %v262, %v266
    %v271 = vsub.f32 %v263, %v269
    %v272 = vmul.f32 %v270, 1.442695
    %v273 = vpow.pop %v272
    %v274 = vmul.f32 %v271, 1.442695
    %v275 = vpow.pop %v274
    %v276 = vsel %vm95, %v273, 0.0
    %277 = vadd.xlane.f32.xlu0 %v276
    %v278 = vpop.xlane.xlu0 %277
    %v279 = vsel %vm95, %v275, 0.0
    %280 = vadd.xlane.f32.xlu0 %v279
    %v281 = vpop.xlane.xlu0 %280
    %v282 = vrcp.pop %v278
    %v283 = vrcp.pop %v281
    %v284 = vmul.f32 %v273, %v282
    %v285 = vmul.f32 %v275, %v283
    %v286 = vpack.c.bf16 %v285, %v284
    %v289 = vunpack.c.l.b16 %v228
    %v290 = vunpack.c.l.b16 %v229
    %v291 = vpack.c.b16 %v290, %v289
    %292 = vrot.lane.b32.xlu0 %v291, 64
    %v293 = vpop.permute.xlu0 %292
    %v296 = vsel %vm95, %v286, 0
    %298 = vmatpush.bf16.msra.mxu0 0
    %299 = vmatpush.bf16.msra.mxu0 0
    %300 = vmatpush.bf16.msra.mxu0 0
    %301 = vmatpush.bf16.msra.mxu0 0
    %302 = vmatpush.bf16.msra.mxu0 0
    %303 = vmatpush.bf16.msra.mxu0 0
    %304 = vmatpush.bf16.msra.mxu0 0
    %305 = vmatpush.bf16.msra.mxu0 %v293
    %306 = vmatmul.bf16.gmra.mxu0 %v296
    %v307 = vpop.f32.mrf.mxu0
    %v308 = vadd.f32 0.0, %v307
    %v309 = vpop.f32.mrf.mxu0
    %v310 = vadd.f32 0.0, %v309
    %311 = vdwg.mxu0
    %312 = vrot.lane.b32.xlu0 %v234, 112
    %v313 = vpop.permute.xlu0 %312
    %314 = vrot.lane.b32.xlu0 %v239, 112
    %v315 = vpop.permute.xlu0 %314
    %v317 = vsel %vm95, %v313, 0
    %v320 = vsel %vm95, %v315, 0
    %322 = vmatpush.bf16.xpose.msra.mxu0 0
    %323 = vmatpush.bf16.xpose.msra.mxu0 0
    %324 = vmatpush.bf16.xpose.msra.mxu0 0
    %325 = vmatpush.bf16.xpose.msra.mxu0 0
    %326 = vmatpush.bf16.xpose.msra.mxu0 0
    %327 = vmatpush.bf16.xpose.msra.mxu0 0
    %328 = vmatpush.bf16.xpose.msra.mxu0 0
    %329 = vmatpush.bf16.xpose.msra.mxu0 %v320
    %330 = vmatmul.bf16.gmra.mxu0 %v317
    %v331 = vpop.f32.mrf.mxu0
    %v332 = vadd.f32 0.0, %v331
    %v333 = vpop.f32.mrf.mxu0
    %v334 = vadd.f32 0.0, %v333
    %335 = vdwg.mxu0
    %v336 = vmul.f32 %v332, 0.25
    %v337 = vmul.f32 %v334, 0.25
    %v338 = vadd.f32 %v336, %v34
    %v339 = vadd.f32 %v337, %v35
    %v340 = vsel %vm95, %v338, -inf
    %341 = vmax.xlane.f32.xlu0 %v340
    %v342 = vpop.xlane.xlu0 %341
    %v343 = vsel %vm95, %v339, -inf
    %344 = vmax.xlane.f32.xlu0 %v343
    %v345 = vpop.xlane.xlu0 %344
    %v346 = vsub.f32 %v338, %v342
    %v347 = vsub.f32 %v339, %v345
    %v348 = vmul.f32 %v346, 1.442695
    %v349 = vpow.pop %v348
    %v350 = vmul.f32 %v347, 1.442695
    %v351 = vpow.pop %v350
    %v352 = vsel %vm95, %v349, 0.0
    %353 = vadd.xlane.f32.xlu0 %v352
    %v354 = vpop.xlane.xlu0 %353
    %v355 = vsel %vm95, %v351, 0.0
    %356 = vadd.xlane.f32.xlu0 %v355
    %v357 = vpop.xlane.xlu0 %356
    %v358 = vrcp.pop %v354
    %v359 = vrcp.pop %v357
    %v360 = vmul.f32 %v349, %v358
    %v361 = vmul.f32 %v351, %v359
    %v362 = vpack.c.bf16 %v361, %v360
    %363 = vrot.lane.b32.xlu0 %v291, 56
    %v364 = vpop.permute.xlu0 %363
    %v367 = vsel %vm95, %v362, 0
    %369 = vmatpush.bf16.msra.mxu0 0
    %370 = vmatpush.bf16.msra.mxu0 0
    %371 = vmatpush.bf16.msra.mxu0 0
    %372 = vmatpush.bf16.msra.mxu0 0
    %373 = vmatpush.bf16.msra.mxu0 0
    %374 = vmatpush.bf16.msra.mxu0 0
    %375 = vmatpush.bf16.msra.mxu0 0
    %376 = vmatpush.bf16.msra.mxu0 %v364
    %377 = vmatmul.bf16.gmra.mxu0 %v367
    %v378 = vpop.f32.mrf.mxu0
    %v379 = vadd.f32 0.0, %v378
    %v380 = vpop.f32.mrf.mxu0
    %v381 = vadd.f32 0.0, %v380
    %382 = vdwg.mxu0
    %383 = vrot.lane.b32.xlu0 %v234, 96
    %v384 = vpop.permute.xlu0 %383
    %385 = vrot.lane.b32.xlu0 %v239, 96
    %v386 = vpop.permute.xlu0 %385
    %v388 = vsel %vm95, %v384, 0
    %v391 = vsel %vm95, %v386, 0
    %393 = vmatpush.bf16.xpose.msra.mxu0 0
    %394 = vmatpush.bf16.xpose.msra.mxu0 0
    %395 = vmatpush.bf16.xpose.msra.mxu0 0
    %396 = vmatpush.bf16.xpose.msra.mxu0 0
    %397 = vmatpush.bf16.xpose.msra.mxu0 0
    %398 = vmatpush.bf16.xpose.msra.mxu0 0
    %399 = vmatpush.bf16.xpose.msra.mxu0 0
    %400 = vmatpush.bf16.xpose.msra.mxu0 %v391
    %401 = vmatmul.bf16.gmra.mxu0 %v388
    %v402 = vpop.f32.mrf.mxu0
    %v403 = vadd.f32 0.0, %v402
    %v404 = vpop.f32.mrf.mxu0
    %v405 = vadd.f32 0.0, %v404
    %406 = vdwg.mxu0
    %v407 = vmul.f32 %v403, 0.25
    %v408 = vmul.f32 %v405, 0.25
    %v409 = vadd.f32 %v407, %v34
    %v410 = vadd.f32 %v408, %v35
    %v411 = vsel %vm95, %v409, -inf
    %412 = vmax.xlane.f32.xlu0 %v411
    %v413 = vpop.xlane.xlu0 %412
    %v414 = vsel %vm95, %v410, -inf
    %415 = vmax.xlane.f32.xlu0 %v414
    %v416 = vpop.xlane.xlu0 %415
    %v417 = vsub.f32 %v409, %v413
    %v418 = vsub.f32 %v410, %v416
    %v419 = vmul.f32 %v417, 1.442695
    %v420 = vpow.pop %v419
    %v421 = vmul.f32 %v418, 1.442695
    %v422 = vpow.pop %v421
    %v423 = vsel %vm95, %v420, 0.0
    %424 = vadd.xlane.f32.xlu0 %v423
    %v425 = vpop.xlane.xlu0 %424
    %v426 = vsel %vm95, %v422, 0.0
    %427 = vadd.xlane.f32.xlu0 %v426
    %v428 = vpop.xlane.xlu0 %427
    %v429 = vrcp.pop %v425
    %v430 = vrcp.pop %v428
    %v431 = vmul.f32 %v420, %v429
    %v432 = vmul.f32 %v422, %v430
    %v433 = vpack.c.bf16 %v432, %v431
    %434 = vrot.lane.b32.xlu0 %v291, 48
    %v435 = vpop.permute.xlu0 %434
    %v438 = vsel %vm95, %v433, 0
    %440 = vmatpush.bf16.msra.mxu0 0
    %441 = vmatpush.bf16.msra.mxu0 0
    %442 = vmatpush.bf16.msra.mxu0 0
    %443 = vmatpush.bf16.msra.mxu0 0
    %444 = vmatpush.bf16.msra.mxu0 0
    %445 = vmatpush.bf16.msra.mxu0 0
    %446 = vmatpush.bf16.msra.mxu0 0
    %447 = vmatpush.bf16.msra.mxu0 %v435
    %448 = vmatmul.bf16.gmra.mxu0 %v438
    %v449 = vpop.f32.mrf.mxu0
    %v450 = vadd.f32 0.0, %v449
    %v451 = vpop.f32.mrf.mxu0
    %v452 = vadd.f32 0.0, %v451
    %453 = vdwg.mxu0
    %454 = vrot.lane.b32.xlu0 %v234, 80
    %v455 = vpop.permute.xlu0 %454
    %456 = vrot.lane.b32.xlu0 %v239, 80
    %v457 = vpop.permute.xlu0 %456
    %v459 = vsel %vm95, %v455, 0
    %v462 = vsel %vm95, %v457, 0
    %464 = vmatpush.bf16.xpose.msra.mxu0 0
    %465 = vmatpush.bf16.xpose.msra.mxu0 0
    %466 = vmatpush.bf16.xpose.msra.mxu0 0
    %467 = vmatpush.bf16.xpose.msra.mxu0 0
    %468 = vmatpush.bf16.xpose.msra.mxu0 0
    %469 = vmatpush.bf16.xpose.msra.mxu0 0
    %470 = vmatpush.bf16.xpose.msra.mxu0 0
    %471 = vmatpush.bf16.xpose.msra.mxu0 %v462
    %472 = vmatmul.bf16.gmra.mxu0 %v459
    %v473 = vpop.f32.mrf.mxu0
    %v474 = vadd.f32 0.0, %v473
    %v475 = vpop.f32.mrf.mxu0
    %v476 = vadd.f32 0.0, %v475
    %477 = vdwg.mxu0
    %v478 = vmul.f32 %v474, 0.25
    %v479 = vmul.f32 %v476, 0.25
    %v480 = vadd.f32 %v478, %v34
    %v481 = vadd.f32 %v479, %v35
    %v482 = vsel %vm95, %v480, -inf
    %483 = vmax.xlane.f32.xlu0 %v482
    %v484 = vpop.xlane.xlu0 %483
    %v485 = vsel %vm95, %v481, -inf
    %486 = vmax.xlane.f32.xlu0 %v485
    %v487 = vpop.xlane.xlu0 %486
    %v488 = vsub.f32 %v480, %v484
    %v489 = vsub.f32 %v481, %v487
    %v490 = vmul.f32 %v488, 1.442695
    %v491 = vpow.pop %v490
    %v492 = vmul.f32 %v489, 1.442695
    %v493 = vpow.pop %v492
    %v494 = vsel %vm95, %v491, 0.0
    %495 = vadd.xlane.f32.xlu0 %v494
    %v496 = vpop.xlane.xlu0 %495
    %v497 = vsel %vm95, %v493, 0.0
    %498 = vadd.xlane.f32.xlu0 %v497
    %v499 = vpop.xlane.xlu0 %498
    %v500 = vrcp.pop %v496
    %v501 = vrcp.pop %v499
    %v502 = vmul.f32 %v491, %v500
    %v503 = vmul.f32 %v493, %v501
    %v504 = vpack.c.bf16 %v503, %v502
    %505 = vrot.lane.b32.xlu0 %v291, 40
    %v506 = vpop.permute.xlu0 %505
    %v509 = vsel %vm95, %v504, 0
    %511 = vmatpush.bf16.msra.mxu0 0
    %512 = vmatpush.bf16.msra.mxu0 0
    %513 = vmatpush.bf16.msra.mxu0 0
    %514 = vmatpush.bf16.msra.mxu0 0
    %515 = vmatpush.bf16.msra.mxu0 0
    %516 = vmatpush.bf16.msra.mxu0 0
    %517 = vmatpush.bf16.msra.mxu0 0
    %518 = vmatpush.bf16.msra.mxu0 %v506
    %519 = vmatmul.bf16.gmra.mxu0 %v509
    %v520 = vpop.f32.mrf.mxu0
    %v521 = vadd.f32 0.0, %v520
    %v522 = vpop.f32.mrf.mxu0
    %v523 = vadd.f32 0.0, %v522
    %524 = vdwg.mxu0
    %527 = vrot.lane.b32.xlu0 %v379, 8
    %v528 = vpop.permute.xlu0 %527
    %529 = vrot.lane.b32.xlu0 %v381, 8
    %v530 = vpop.permute.xlu0 %529
    %535 = vrot.lane.b32.xlu0 %v450, 16
    %v536 = vpop.permute.xlu0 %535
    %537 = vrot.lane.b32.xlu0 %v452, 16
    %v538 = vpop.permute.xlu0 %537
    %543 = vrot.lane.b32.xlu0 %v521, 24
    %v544 = vpop.permute.xlu0 %543
    %545 = vrot.lane.b32.xlu0 %v523, 24
    %v546 = vpop.permute.xlu0 %545
    %vm549 = vcmask 64512
    %v550 = vsel %vm549, %v308, %v528
    %v551 = vsel %vm549, %v310, %v530
    %v552 = vsel %vm95, %v550, %v536
    %v553 = vsel %vm95, %v551, %v538
    %vm554 = vcmask 195584
    %v555 = vsel %vm554, %v552, %v544
    %v556 = vsel %vm554, %v553, %v546
    %v557 = vpack.c.bf16 %v556, %v555
    %v562 = vunpack.c.l.b16 %v26
    %v563 = vunpack.c.l.b16 %v27
    %v564 = vunpack.c.l.b16 %v28
    %v565 = vunpack.c.l.b16 %v29
    %v566 = vpack.c.b16 %v563, %v562
    %v567 = vpack.c.b16 %v565, %v564
    %v571 = vsel %vm61, %v557, 0
    %573 = vmatpush.bf16.msra.mxu0 0
    %574 = vmatpush.bf16.msra.mxu0 0
    %575 = vmatpush.bf16.msra.mxu0 0
    %576 = vmatpush.bf16.msra.mxu0 0
    %577 = vmatpush.bf16.msra.mxu0 0
    %578 = vmatpush.bf16.msra.mxu0 0
    %579 = vmatpush.bf16.msra.mxu0 %v567
    %580 = vmatpush.bf16.msra.mxu0 %v566
    %581 = vmatmul.bf16.gmra.mxu0 %v571
    %v582 = vpop.f32.mrf.mxu0
    %v583 = vadd.f32 0.0, %v582
    %v584 = vpop.f32.mrf.mxu0
    %v585 = vadd.f32 0.0, %v584
    %586 = vdwg.mxu0
    %587 = vst.msk [vmem:[#allocation2] sm:$0xff] %vm61, %v583
    %588 = vst.msk [vmem:[#allocation2 + $0x8] sm:$0xff] %vm61, %v585
    // Predicated region
    $region14: #{tpu_custom_call.1} parent=1 // pred_check
      _
    $region15: #{tpu_custom_call.1} parent=1 // pred_check_branch
      %590 = sbr.rel (0) target = $region17
    $region16: #{tpu_custom_call.1} parent=1 // pred_region
      %592 = vsyncadd [#allocation3], 0
      %s593 = sshll.u32 [#allocation2], 4
      %s594 = int_to_ptr.vmem [resolvable:$true] %s593
      %s595 = sshll.u32 %s3, 4
      %s596 = int_to_ptr.hbm [resolvable:$true] %s595
      %601 = dma.vmem_to_hbm [thread:$0]  %s594, 256, %s596, [#allocation3], 128, 128, 8
    $region17: #{tpu_custom_call.1} parent=1 // pred_fallthru
      _
    // Predicated region
    $region18: #{tpu_custom_call.1} parent=1 // pred_check
      _
    $region19: #{tpu_custom_call.1} parent=1 // pred_check_branch
      %603 = sbr.rel (0) target = $region21
    $region20: #{tpu_custom_call.1} parent=1 // pred_region
      %605 = dma.done [#allocation3], 256
    $region21: #{tpu_custom_call.1} parent=1 // pred_fallthru
      _
    %606 = vsyncpa [#allocation3], 1

</llo_original>
